<compile_context>
chip_gen: v5e
topology: v5e:2x2
jax: 0.10.0
libtpu: 0.0.40
codegen_flags: <defaults>
</compile_context>

<pallas_src>
import functools

import jax
import jax.numpy as jnp
import numpy as np
from jax import lax
from jax.experimental import pallas as pl
from jax.experimental.pallas import tpu as pltpu


# ---------------------------------------------------------------------------
# Wrapper-side helpers
# ---------------------------------------------------------------------------
def _toeplitz(conv_weight, c, k_size):
    """Banded (C, C) matrix T with T[r, i] = w[r - i + pad]; m @ T == zero-padded Conv1d."""
    w = conv_weight.reshape(-1).astype(jnp.float32)
    pad = (k_size - 1) // 2
    row = lax.broadcasted_iota(jnp.int32, (c, c), 0)
    col = lax.broadcasted_iota(jnp.int32, (c, c), 1)
    t = jnp.zeros((c, c), jnp.float32)
    for j in range(k_size):
        t = t + jnp.where(row - col == j - pad, w[j], 0.0)
    return t


def _vmem_capacity_bytes():
    try:
        cap = int(getattr(pltpu.get_tpu_info(), "vmem_capacity_bytes"))
        if cap > 0:
            return cap
    except Exception:
        pass
    return 64 * 1024 * 1024  # conservative fallback (v7x per-TensorCore VMEM)


# ---------------------------------------------------------------------------
# Fused single-pass kernel (small / mid feature maps): nb whole images per step.
# ---------------------------------------------------------------------------
def _ca_fused_kernel(t_ref, x_ref, o_ref, *, hw_true):
    # t_ref: (C, C) f32 Toeplitz (DMA'd once); x_ref/o_ref: (nb, C, HW)
    x = x_ref[...]
    m = jnp.sum(x, axis=-1, dtype=jnp.float32) * (1.0 / hw_true)            # (nb, C)
    gate = jax.nn.sigmoid(jnp.dot(m, t_ref[...], preferred_element_type=jnp.float32))
    o_ref[...] = x * gate[:, :, None].astype(o_ref.dtype)


# ---------------------------------------------------------------------------
# Two-pass kernels (large feature maps): bounded VMEM independent of H*W.
# Pass 1: per-(image, split) partial spatial sums (fully parallel over n and split).
# Pass 2: finalize (sum splits -> mean -> conv -> sigmoid, all tiny) and scale x.
# ---------------------------------------------------------------------------
def _ca_partial_sum_kernel(x_ref, part_ref, *, hw_blk, hw_true, hw_per_split):
    # grid = (N, n_split, hw_per_split); x_ref: (1, C, hw_blk); part_ref: (1, C) f32
    s = pl.program_id(1)
    h = pl.program_id(2)

    @pl.when(h == 0)
    def _():
        part_ref[...] = jnp.zeros_like(part_ref)

    g = s * hw_per_split + h                 # global hw-block index (may overshoot)
    start = g * hw_blk
    lane = lax.broadcasted_iota(jnp.int32, x_ref.shape, 2)
    mask = (start + lane) < hw_true          # ragged tail AND fully-OOB duplicates -> 0
    xm = jnp.where(mask, x_ref[...], 0)
    part_ref[...] += jnp.sum(xm, axis=-1, dtype=jnp.float32)


def _ca_scale_kernel(part_ref, t_ref, x_ref, o_ref, *, n_split, hw_true):
    # part_ref: (N*n_split, C) f32 (whole array, DMA'd once); t_ref: (C, C) f32
    # x_ref/o_ref: (1, C, hw_blk)
    n = pl.program_id(0)
    rows = part_ref[pl.ds(n * n_split, n_split), :]                          # (n_split, C)
    m = jnp.sum(rows, axis=0, keepdims=True) * (1.0 / hw_true)               # (1, C)
    gate = jax.nn.sigmoid(jnp.dot(m, t_ref[...], preferred_element_type=jnp.float32))
    o_ref[...] = x_ref[...] * gate[:, :, None].astype(o_ref.dtype)


# ---------------------------------------------------------------------------
# Wrapper
# ---------------------------------------------------------------------------
def channel_attention(x, conv_weight, k_size=3, *, force_two_pass=False,
                      max_lanes_per_block=None, gate_hw_splits=None):
    """x: (N, C, H, W); conv_weight: (k,) or (1, 1, k); returns (N, C, H, W)."""
    N, C, H, W = x.shape
    HW = H * W
    itemsize = jnp.dtype(x.dtype).itemsize

    x3 = x.reshape(N, C, HW)                         # contiguous reshape: no HBM pass
    t = _toeplitz(conv_weight, C, k_size)            # built once, streamed to VMEM once
    t_bytes = C * C * 4

    vmem_cap = _vmem_capacity_bytes()
    vmem_limit = int(vmem_cap * 3 // 4)              # ~96 MiB v5e/v6e, ~48 MiB v7x

    def comp(sem):
        return pltpu.CompilerParams(dimension_semantics=sem,
                                    vmem_limit_bytes=vmem_limit)

    per_image_bytes = C * HW * itemsize
    fused_cutoff = vmem_limit // 8                   # ~12 MiB v5e/v6e, ~6 MiB v7x
    use_fused = (not force_two_pass) and per_image_bytes <= fused_cutoff
    # Batch-1 large maps: prefer two-pass — its grids have a parallel HW axis so both
    # v7x TensorCores get work and the pipeline has more than one step to overlap.
    if N == 1 and per_image_bytes > (1 << 20):
        use_fused = False

    if use_fused:
        nb_budget = max(1, (vmem_limit - t_bytes - (2 << 20)) // (4 * per_image_bytes))
        nb = max(1, min(N, nb_budget, max(1, N // min(N, 4))))   # keep >= min(N,4) steps
        if nb * per_image_bytes < (512 << 10):                    # but >= ~0.5 MiB / step
            nb = min(N, nb_budget, max(nb, -(-(512 << 10) // per_image_bytes)))
        nb = max(1, nb)
        grid0 = -(-N // nb)                                       # cdiv: ragged last N block OK

        kern = functools.partial(_ca_fused_kernel, hw_true=HW)
        out3 = pl.pallas_call(
            kern,
            out_shape=jax.ShapeDtypeStruct((N, C, HW), x.dtype),
            grid=(grid0,),
            in_specs=[
                pl.BlockSpec((C, C), lambda i: (0, 0)),           # Toeplitz, loaded once
                pl.BlockSpec((nb, C, HW), lambda i: (i, 0, 0)),
            ],
            out_specs=pl.BlockSpec((nb, C, HW), lambda i: (i, 0, 0)),
            compiler_params=comp(("parallel",)),
        )(t, x3)
    else:
        # Lane-dense HW block sized from the VMEM budget (1-4 MiB target).
        max_blk_bytes = min(4 << 20, vmem_limit // 8)
        hw_blk = (max_blk_bytes // (C * itemsize)) // 128 * 128
        hw_blk = max(128, min(hw_blk, -(-HW // 128) * 128))
        if max_lanes_per_block is not None:
            hw_blk = max(128, min(hw_blk, (max_lanes_per_block // 128) * 128))
        num_hw = -(-HW // hw_blk)                                 # cdiv grid, ragged tail masked

        # Parallel split of the HW reduction (keeps 2 TCs busy even at N == 1).
        n_split = gate_hw_splits if gate_hw_splits is not None else max(1, 8 // N)
        n_split = int(max(1, min(n_split, num_hw)))
        hw_per_split = -(-num_hw // n_split)

        gate_kern = functools.partial(_ca_partial_sum_kernel, hw_blk=hw_blk,
                                      hw_true=HW, hw_per_split=hw_per_split)

        def x_gate_map(n, s, h):
            g = s * hw_per_split + h
            return (n, 0, jnp.minimum(g, num_hw - 1))             # clamp; dupes masked in-kernel

        partials = pl.pallas_call(
            gate_kern,
            out_shape=jax.ShapeDtypeStruct((N * n_split, C), jnp.float32),
            grid=(N, n_split, hw_per_split),
            in_specs=[pl.BlockSpec((1, C, hw_blk), x_gate_map)],
            out_specs=pl.BlockSpec((1, C), lambda n, s, h: (n * n_split + s, 0)),
            compiler_params=comp(("parallel", "parallel", "arbitrary")),
        )(x3)

        scale_kern = functools.partial(_ca_scale_kernel, n_split=n_split, hw_true=HW)
        out3 = pl.pallas_call(
            scale_kern,
            out_shape=jax.ShapeDtypeStruct((N, C, HW), x.dtype),
            grid=(N, num_hw),
            in_specs=[
                pl.BlockSpec((N * n_split, C), lambda n, h: (0, 0)),   # tiny, loaded once
                pl.BlockSpec((C, C), lambda n, h: (0, 0)),             # Toeplitz, loaded once
                pl.BlockSpec((1, C, hw_blk), lambda n, h: (n, 0, h)),
            ],
            out_specs=pl.BlockSpec((1, C, hw_blk), lambda n, h: (n, 0, h)),
            compiler_params=comp(("parallel", "parallel")),
        )(partials, t, x3)

    return out3.reshape(N, C, H, W)


def channel_attention_ref(x, conv_weight, k_size=3):
    """Pure-JAX reference of the PyTorch forward."""
    N, C, H, W = x.shape
    pad = (k_size - 1) // 2
    w = conv_weight.reshape(-1)
    y = jnp.mean(x, axis=(2, 3))                                 # (N, C)
    yp = jnp.pad(y, ((0, 0), (pad, pad)))
    conv = sum(w[j] * yp[:, j:j + C] for j in range(k_size))
    s = jax.nn.sigmoid(conv)
    return x * s[:, :, None, None]


if __name__ == "__main__":
    key = jax.random.PRNGKey(0)
    kx, kw, kx2, kx3, kx4 = jax.random.split(key, 5)

    k_size = 3
    # Conv1d(1, 1, 3, bias=False) weight, PyTorch shape (1, 1, k) -> flattened (k,).
    conv_weight = (jax.random.uniform(kw, (k_size,), dtype=jnp.float32) - 0.5) * 1.1547

    # 1) Small map -> fused path (full-extent blocks).
    x = jax.random.normal(kx, (2, 4, 16, 16), dtype=jnp.float32)
    out = jax.block_until_ready(channel_attention(x, conv_weight, k_size=k_size))
    ref = channel_attention_ref(x, conv_weight, k_size=k_size)
    np.testing.assert_allclose(np.asarray(out), np.asarray(ref), rtol=1e-5, atol=1e-5)

    # 2) Fused path with H*W not a multiple of 128 (no wrapper pad, full-dim block).
    x3 = jax.random.normal(kx3, (2, 4, 12, 20), dtype=jnp.float32)          # HW = 240
    out3 = jax.block_until_ready(channel_attention(x3, conv_weight, k_size=k_size))
    ref3 = channel_attention_ref(x3, conv_weight, k_size=k_size)
    np.testing.assert_allclose(np.asarray(out3), np.asarray(ref3), rtol=1e-5, atol=1e-5)

    # 3) Two-pass path: ragged last HW block + parallel split of the reduction (N=1).
    x2 = jax.random.normal(kx2, (1, 8, 12, 20), dtype=jnp.float32)          # HW = 240 -> 2 blocks
    out2 = jax.block_until_ready(
        channel_attention(x2, conv_weight, k_size=k_size,
                          force_two_pass=True, max_lanes_per_block=128))
    ref2 = channel_attention_ref(x2, conv_weight, k_size=k_size)
    np.testing.assert_allclose(np.asarray(out2), np.asarray(ref2), rtol=1e-5, atol=1e-5)

    # 4) Two-pass path where the split over-covers the HW blocks (clamped + fully
    #    masked duplicate block): HW = 320 -> 3 blocks of 128, 2 splits of 2.
    x4 = jax.random.normal(kx4, (1, 8, 16, 20), dtype=jnp.float32)
    out4 = jax.block_until_ready(
        channel_attention(x4, conv_weight, k_size=k_size,
                          force_two_pass=True, max_lanes_per_block=128,
                          gate_hw_splits=2))
    ref4 = channel_attention_ref(x4, conv_weight, k_size=k_size)
    np.testing.assert_allclose(np.asarray(out4), np.asarray(ref4), rtol=1e-5, atol=1e-5)

    print("KERNEL_OK")
</pallas_src>

<mosaic_0001>
module attributes {stable_mosaic.version = 11 : i64} {
  func.func @_ca_fused_kernel(%arg0: i32, %arg1: memref<4x4xf32, #tpu.memory_space<vmem>>, %arg2: memref<2x4x256xf32, #tpu.memory_space<vmem>>, %arg3: memref<2x4x256xf32, #tpu.memory_space<vmem>>) attributes {dimension_semantics = [#tpu.dimension_semantics<parallel>], iteration_bounds = array<i64: 1>, scalar_prefetch = 0 : i64, scratch_operands = 0 : i64, tpu.core_type = #tpu.core_type<tc>, window_params = [{pipeline_mode = #tpu.pipeline_mode<synchronous>, transform_indices = @transform_0, window_bounds = array<i64: 4, 4>}, {transform_indices = @transform_1, window_bounds = array<i64: 2, 4, 256>}, {transform_indices = @transform_2, window_bounds = array<i64: 2, 4, 256>}]} {
    %c0 = arith.constant 0 : index
    %c0_0 = arith.constant 0 : index
    %c0_1 = arith.constant 0 : index
    %0 = vector.load %arg2[%c0, %c0_0, %c0_1] : memref<2x4x256xf32, #tpu.memory_space<vmem>>, vector<2x4x256xf32>
    %cst = arith.constant dense<0.000000e+00> : vector<2x4xf32>
    %1 = vector.multi_reduction <add>, %0, %cst [2] : vector<2x4x256xf32> to vector<2x4xf32>
    %cst_2 = arith.constant 3.906250e-03 : f32
    %2 = vector.broadcast %cst_2 : f32 to vector<2x4xf32>
    %3 = arith.mulf %1, %2 : vector<2x4xf32>
    %c0_3 = arith.constant 0 : index
    %c0_4 = arith.constant 0 : index
    %4 = vector.load %arg1[%c0_3, %c0_4] : memref<4x4xf32, #tpu.memory_space<vmem>>, vector<4x4xf32>
    %cst_5 = arith.constant dense<0.000000e+00> : vector<2x4xf32>
    %5 = tpu.matmul %3, %4, %cst_5 {dimension_numbers = #tpu.dot_dimension_numbers<[1], [0], [0], [1], [0, 0, 1, 1], [], []>} : vector<2x4xf32>, vector<4x4xf32>, vector<2x4xf32> -> vector<2x4xf32>
    %6 = arith.negf %5 : vector<2x4xf32>
    %7 = math.exp %6 : vector<2x4xf32>
    %cst_6 = arith.constant 1.000000e+00 : f32
    %8 = vector.broadcast %cst_6 : f32 to vector<2x4xf32>
    %9 = arith.addf %8, %7 : vector<2x4xf32>
    %10 = arith.divf %8, %9 : vector<2x4xf32>
    %11 = vector.shape_cast %10 : vector<2x4xf32> to vector<2x4x1xf32>
    %12 = vector.broadcast %11 : vector<2x4x1xf32> to vector<2x4x256xf32>
    %13 = arith.mulf %0, %12 : vector<2x4x256xf32>
    %c0_7 = arith.constant 0 : index
    %c0_8 = arith.constant 0 : index
    %c0_9 = arith.constant 0 : index
    %14 = vector.load %arg3[%c0_7, %c0_8, %c0_9] : memref<2x4x256xf32, #tpu.memory_space<vmem>>, vector<2x4x256xf32>
    tpu.vector_store %arg3[%c0_7, %c0_8, %c0_9], %13 {strides = array<i32>} : memref<2x4x256xf32, #tpu.memory_space<vmem>>, vector<2x4x256xf32>,
    return
  }
  func.func @transform_0(%arg0: i32) -> (i32, i32) {
    %c0_i32 = arith.constant 0 : i32
    %c0_i32_0 = arith.constant 0 : i32
    %c0_i32_1 = arith.constant 0 : i32
    return %c0_i32, %c0_i32_0 : i32, i32
  }
  func.func @transform_1(%arg0: i32) -> (i32, i32, i32) {
    %c0_i32 = arith.constant 0 : i32
    %c0_i32_0 = arith.constant 0 : i32
    %c0_i32_1 = arith.constant 0 : i32
    return %arg0, %c0_i32, %c0_i32_0 : i32, i32, i32
  }
  func.func @transform_2(%arg0: i32) -> (i32, i32, i32) {
    %c0_i32 = arith.constant 0 : i32
    %c0_i32_0 = arith.constant 0 : i32
    %c0_i32_1 = arith.constant 0 : i32
    return %arg0, %c0_i32, %c0_i32_0 : i32, i32, i32
  }
}

</mosaic_0001>

<llo_original>
// kernel: tpu_custom_call.1
$region0: #{tpu_custom_call.1}
  #allocation0 [shape = 'u32[]', space=smem, size = 0x4, offset = 0x4, fixed_abs, tag = 'smem constant byte address 0x4 - core index']
  #allocation1 [shape = 'u32[72,128]{1,0:T(1,128)}', space=vmem, size = 0x9000, scoped, tag = 'internal scratch']
  %s0 = inlined_call_operand.hbm [shape: f32[4,4], index: 0, kind: input, shape index: {}]
  %s1 = inlined_call_operand.hbm [shape: f32[2,4,256], index: 1, kind: input, shape index: {}]
  %s2 = inlined_call_operand.hbm [shape: f32[2,4,256], index: 2, kind: output, shape index: {}]
  %s3 = sld [smem:[#allocation0]]
  $region26: #{tpu_custom_call.1} parent=0
    _
  %s5 = ssub.s32 1, %s3
  %s6 = scalar_select 0, %s5, %s3
  $region1: #{tpu_custom_call.1} parent=0
    #allocation2 [shape = 'u8[2048]{0}', space=vmem, size = 0x800, scoped, tag = 'input window, operand 0, single buffered']
    #allocation3 [shape = 's32[1]{0}', space=sflag, size = 0x4, scoped, tag = 'scoped memory for tpu_custom_call.1']
    #allocation4 [shape = 's32[1]{0}', space=sflag, size = 0x4, scoped, tag = 'scoped memory for tpu_custom_call.1']
    #allocation5 [shape = 'u8[8192]{0}', space=vmem, size = 0x2000, scoped, tag = 'input window, operand 1, single buffered']
    #allocation6 [shape = 's32[1]{0}', space=sflag, size = 0x4, scoped, tag = 'scoped memory for tpu_custom_call.1']
    #allocation7 [shape = 'u8[8192]{0}', space=vmem, size = 0x2000, scoped, tag = 'output window, operand 0, single buffered']
    %7 = vsyncpa [#allocation3], 0
    %8 = vsyncpa [#allocation6], 0
    %9 = vsyncpa [#allocation4], 0
    // Predicated region
    $region2: #{tpu_custom_call.1} parent=1 // pred_check
      _
    $region3: #{tpu_custom_call.1} parent=1 // pred_check_branch
      %11 = sbr.rel (0) target = $region5
    $region4: #{tpu_custom_call.1} parent=1 // pred_region
      %13 = vsyncadd [#allocation3], 0
      %s15 = sshll.u32 %s0, 4
      %s16 = int_to_ptr.hbm [resolvable:$true] %s15
      %s17 = sshll.u32 [#allocation2], 4
      %s18 = int_to_ptr.vmem [resolvable:$true] %s17
      %20 = dma.hbm_to_vmem [thread:$0]  %s16, 64, %s18, [#allocation3]
    $region5: #{tpu_custom_call.1} parent=1 // pred_fallthru
      _
    // Predicated region
    $region6: #{tpu_custom_call.1} parent=1 // pred_check
      _
    $region7: #{tpu_custom_call.1} parent=1 // pred_check_branch
      %22 = sbr.rel (0) target = $region9
    $region8: #{tpu_custom_call.1} parent=1 // pred_region
      %24 = vsyncadd [#allocation6], 0
      %s25 = sshll.u32 %s1, 4
      %s26 = int_to_ptr.hbm [resolvable:$true] %s25
      %s27 = sshll.u32 [#allocation5], 4
      %s28 = int_to_ptr.vmem [resolvable:$true] %s27
      %33 = dma.hbm_to_vmem [thread:$0]  %s26, 256, %s28, [#allocation6], 128, 128, 8
    $region9: #{tpu_custom_call.1} parent=1 // pred_fallthru
      _
    // Predicated region
    $region10: #{tpu_custom_call.1} parent=1 // pred_check
      _
    $region11: #{tpu_custom_call.1} parent=1 // pred_check_branch
      %35 = sbr.rel (0) target = $region13
    $region12: #{tpu_custom_call.1} parent=1 // pred_region
      %37 = dma.done [#allocation3], 64
    $region13: #{tpu_custom_call.1} parent=1 // pred_fallthru
      _
    // Predicated region
    $region14: #{tpu_custom_call.1} parent=1 // pred_check
      _
    $region15: #{tpu_custom_call.1} parent=1 // pred_check_branch
      %39 = sbr.rel (0) target = $region17
    $region16: #{tpu_custom_call.1} parent=1 // pred_region
      %41 = dma.done [#allocation6], 256
    $region17: #{tpu_custom_call.1} parent=1 // pred_fallthru
      _
    %v42 = vld [vmem:[#allocation5] sm:$0xff]
    %v43 = vld [vmem:[#allocation5 + $0x8] sm:$0xff]
    %46 = vst [vmem:[#allocation1] ss:$2 sm:$0xff] %v42
    %v47 = vld.sshfl [vmem:[#allocation1] sm:$0xff pattern:$0x75316420]
    %v48 = vld.sshfl [vmem:[#allocation1 + $0x8] sm:$0xff pattern:$0x75316420]
    %s49 = scalar_lea.vmem [#allocation1], 16
    %50 = vst [vmem:[%s49] ss:$2 sm:$0xff] %v43
    %v51 = vld.sshfl [vmem:[#allocation1 + $0x10] sm:$0xff pattern:$0x75316420]
    %v52 = vld.sshfl [vmem:[#allocation1 + $0x18] sm:$0xff pattern:$0x75316420]
    %vm57 = vcmask 1043456
    %v58 = vsel %vm57, %v47, 0.0
    %v59 = vsel %vm57, %v48, 0.0
    %v60 = vadd.f32 %v58, %v59
    %61 = vadd.xlane.f32.xlu0 %v60
    %v62 = vpop.xlane.xlu0 %61
    %v63 = vsel %vm57, %v51, 0.0
    %v64 = vsel %vm57, %v52, 0.0
    %v65 = vadd.f32 %v63, %v64
    %66 = vadd.xlane.f32.xlu0 %v65
    %v67 = vpop.xlane.xlu0 %66
    %v68 = vmul.f32 %v62, 0.00390625
    %v69 = vmul.f32 %v67, 0.00390625
    %v70 = vld [vmem:[#allocation2] sm:$0xf]
    %v73 = vlaneseq
    %v74 = vand.u32 %v73, 127
    %v75 = vperm.slane %v68, %v74
    %v76 = vperm.slane %v69, %v74
    %vm77 = vcmask 1041409
    %v78 = vsel %vm77, %v76, %v75
    %vm79 = vcmask 31744
    %v80 = vsel %vm79, %v78, 0
    %v83 = vsel %vm57, %v70, 0
    %85 = vmatpush.msra.mxu0 0.0
    %86 = vmatpush.msra.mxu0 0.0
    %87 = vmatpush.msra.mxu0 0.0
    %88 = vmatpush.msra.mxu0 0.0
    %89 = vmatpush.msra.mxu0 0.0
    %90 = vmatpush.msra.mxu0 0.0
    %91 = vmatpush.msra.mxu0 0.0
    %92 = vmatpush.msra.mxu0 0.0
    %93 = vmatpush.msra.mxu0 0.0
    %94 = vmatpush.msra.mxu0 0.0
    %95 = vmatpush.msra.mxu0 0.0
    %96 = vmatpush.msra.mxu0 0.0
    %97 = vmatpush.msra.mxu0 0.0
    %98 = vmatpush.msra.mxu0 0.0
    %99 = vmatpush.msra.mxu0 0.0
    %100 = vmatpush.msra.mxu0 %v83
    %101 = vmatmul.f32.gmra.mxu0 %v80
    %v102 = vpop.f32.mrf.mxu0
    %v103 = vadd.f32 0.0, %v102
    %104 = vdwg.mxu0
    %v105 = vxor.u32 %v103, 2147483648
    %v106 = vmul.f32 %v105, 1.442695
    %v107 = vpow.pop %v106
    %v108 = vadd.f32 %v107, 1.0
    %v109 = vrcp.pop %v108
    %v110 = vmul.f32 %v108, %v109
    %v111 = vsub.f32 1.0, %v110
    %v112 = vmul.f32 %v109, %v111
    %v113 = vadd.f32 %v109, %v112
    %vm114 = vweird.f32 %v108
    %vm115 = vweird.f32 %v109
    %vm116 = vmor %vm114, %vm115
    %v117 = vsel %vm116, %v109, %v113
    %v118 = vand.u32 2147483647, %v108
    %vm119 = vcmp.eq.f32.partialorder %v118, 8.507059e+37
    %v120 = vand.u32 %v108, 2147483648
    %v121 = vor.u32 1.1754944e-38, %v120
    %v122 = vsel %vm119, %v121, %v117
    %v123 = vmul.f32 1.0, %v122
    %v124 = vperm.slane %v123, 0
    %v125 = vlaneseq
    %v126 = vshrl.u32 %v125, 7
    %128 = vset.pattern.permute.xlu0 %v126
    %129 = vperm.xlu0 %128, %v124
    %v130 = vpop.permute.xlu0 %129
    %v131 = vperm.slane %v123, 1
    %v132 = vlaneseq
    %v133 = vshrl.u32 %v132, 7
    %135 = vset.pattern.permute.xlu0 %v133
    %136 = vperm.xlu0 %135, %v131
    %v137 = vpop.permute.xlu0 %136
    %v141 = vunpack.c.l.s4 839922192
    %v142 = vunpack.c.0.s8 %v141
    %v143 = vperm.slane %v130, %v142
    %v145 = vunpack.c.l.s4 839922192
    %v146 = vunpack.c.0.s8 %v145
    %v147 = vperm.slane %v137, %v146
    %v150 = vmul.f32 %v42, %v143
    %v151 = vmul.f32 %v43, %v147
    %152 = vst [vmem:[#allocation7] sm:$0xff] %v150
    %153 = vst [vmem:[#allocation7 + $0x8] sm:$0xff] %v151
    // Predicated region
    $region18: #{tpu_custom_call.1} parent=1 // pred_check
      _
    $region19: #{tpu_custom_call.1} parent=1 // pred_check_branch
      %155 = sbr.rel (0) target = $region21
    $region20: #{tpu_custom_call.1} parent=1 // pred_region
      %157 = vsyncadd [#allocation4], 0
      %s158 = sshll.u32 [#allocation7], 4
      %s159 = int_to_ptr.vmem [resolvable:$true] %s158
      %s160 = sshll.u32 %s2, 4
      %s161 = int_to_ptr.hbm [resolvable:$true] %s160
      %166 = dma.vmem_to_hbm [thread:$0]  %s159, 256, %s161, [#allocation4], 128, 128, 8
    $region21: #{tpu_custom_call.1} parent=1 // pred_fallthru
      _
    // Predicated region
    $region22: #{tpu_custom_call.1} parent=1 // pred_check
      _
    $region23: #{tpu_custom_call.1} parent=1 // pred_check_branch
      %168 = sbr.rel (0) target = $region25
    $region24: #{tpu_custom_call.1} parent=1 // pred_region
      %170 = dma.done [#allocation4], 256
    $region25: #{tpu_custom_call.1} parent=1 // pred_fallthru
      _
    %171 = vsyncpa [#allocation3], 1
    %172 = vsyncpa [#allocation6], 1
    %173 = vsyncpa [#allocation4], 1

</llo_original>
